<compile_context>
chip_gen: v6e
topology: v6e:2x2x1
jax: 0.10.0
libtpu: 0.0.40
codegen_flags: <defaults>
</compile_context>

<pallas_src>
import functools

import jax
import jax.numpy as jnp
import numpy as np
from jax.experimental import pallas as pl
from jax.experimental.pallas import tpu as pltpu

NUM_LAYERS = 10   # layers per Block in the PyTorch module
FEATURES = 128


def _is_v5e():
    """Generation check: keep 128-wide chains on v5e, 256-wide fusion elsewhere."""
    try:
        kind = jax.devices()[0].device_kind.lower()
    except Exception:  # pragma: no cover - CPU/interpret fallback
        return False
    return ("v5 lite" in kind) or ("v5e" in kind) or ("v5litepod" in kind)


_IS_V5E = _is_v5e()


def _pad_batch(x):
    """Pad batch to a multiple of 128 so tiling/pipelining never degrades."""
    B = x.shape[0]
    Bp = ((B + 127) // 128) * 128
    if Bp != B:
        x = jnp.pad(x, ((0, Bp - B), (0, 0)))
    return x, B


def _batch_tile(B):
    """Largest tile that divides B; when B >= 256, force >=2 grid steps so
    v7x's two TensorCores both get work (dimension_semantics="parallel")."""
    for tb in (2048, 1024, 512, 256, 128):
        if B % tb == 0 and (B // tb >= 2 or B <= 128):
            return tb
    return min(B, 128)


# ---------------------------------------------------------------------------
# Fast path: offline-collapsed affine map -> single matmul + bias kernel.
# ---------------------------------------------------------------------------
def _fused_affine_kernel(x_ref, w_ref, b_ref, o_ref):
    o_ref[...] = (
        jnp.dot(x_ref[...], w_ref[...], preferred_element_type=jnp.float32)
        + b_ref[...]
    ).astype(o_ref.dtype)


def collapse_params(w1, b1, w2, b2):
    """One-time precompute (weights reused across calls), done in float64 on
    host so the 10-matrix product does not accumulate f32 rounding error:
        Net(x) = x @ (W1_eff + W2_eff) + (b1_eff + b2_eff)."""
    def collapse_block(w, b):
        w = np.asarray(w, np.float64)
        b = np.asarray(b, np.float64)
        F = w.shape[-1]
        w_eff = np.eye(F)
        b_eff = np.zeros((1, F))
        for i in range(w.shape[0]):
            w_eff = w_eff @ w[i]
            b_eff = b_eff @ w[i] + b[i][None, :]
        return w_eff, b_eff

    w1e, b1e = collapse_block(w1, b1)
    w2e, b2e = collapse_block(w2, b2)
    return (jnp.asarray(w1e + w2e, jnp.float32),
            jnp.asarray(b1e + b2e, jnp.float32))


@jax.jit
def _net_forward_padded(x, w_eff, b_eff):
    B, F = x.shape
    tb = _batch_tile(B)
    # TODO(synk): for a pure bandwidth win on all generations, store x/w_eff in
    # bf16 (keep preferred_element_type=f32) -- this kernel is HBM-bound.
    return pl.pallas_call(
        _fused_affine_kernel,
        out_shape=jax.ShapeDtypeStruct((B, F), x.dtype),
        grid_spec=pltpu.PrefetchScalarGridSpec(
            num_scalar_prefetch=0,
            grid=(B // tb,),
            in_specs=[
                pl.BlockSpec((tb, F), lambda i: (i, 0)),   # batch-tiled LHS
                pl.BlockSpec((F, F), lambda i: (0, 0)),    # resident weights
                pl.BlockSpec((1, F), lambda i: (0, 0)),    # resident bias
            ],
            out_specs=pl.BlockSpec((tb, F), lambda i: (i, 0)),
        ),
        compiler_params=pltpu.CompilerParams(
            dimension_semantics=("parallel",)),
    )(x, w_eff, b_eff)


def net_forward(x, w_eff, b_eff):
    """Collapsed forward. x: (B, F); w_eff: (F, F); b_eff: (1, F)."""
    xp, B = _pad_batch(x)
    return _net_forward_padded(xp, w_eff, b_eff)[:B]


# ---------------------------------------------------------------------------
# Module-structured path: full 20-layer chain in one kernel, batch-gridded.
# ---------------------------------------------------------------------------
def _chain_kernel_fused(x_ref, w0_ref, b0_ref, wd_ref, bd_ref, o_ref):
    """v6e/v7x: one 256-wide chain.  Layer 0: x @ [w1[0] | w2[0]] (prebuilt in
    the wrapper).  Layers 1..9: 256x256 block-diagonal weights."""
    F = x_ref.shape[-1]
    h = (jnp.dot(x_ref[...], w0_ref[...], preferred_element_type=jnp.float32)
         + b0_ref[...])                                          # (tb, 2F)
    for i in range(NUM_LAYERS - 1):
        h = (jnp.dot(h, wd_ref[i], preferred_element_type=jnp.float32)
             + bd_ref[i:i + 1, :])
    o_ref[...] = (h[:, :F] + h[:, F:]).astype(o_ref.dtype)


def _chain_kernel_split(x_ref, w0_ref, b0_ref,
                        w1_ref, b1_ref, w2_ref, b2_ref, o_ref):
    """v5e: shared 256-wide layer 0 (fills two 128^2 MXU tiles usefully),
    then two independent 128-wide chains that interleave on the 4 MXUs."""
    F = x_ref.shape[-1]
    h0 = (jnp.dot(x_ref[...], w0_ref[...], preferred_element_type=jnp.float32)
          + b0_ref[...])                                         # (tb, 2F)
    h1 = h0[:, :F]
    h2 = h0[:, F:]
    for i in range(NUM_LAYERS - 1):
        h1 = (jnp.dot(h1, w1_ref[i], preferred_element_type=jnp.float32)
              + b1_ref[i:i + 1, :])
        h2 = (jnp.dot(h2, w2_ref[i], preferred_element_type=jnp.float32)
              + b2_ref[i:i + 1, :])
    o_ref[...] = (h1 + h2).astype(o_ref.dtype)


def _layer0_cat(w1, b1, w2, b2):
    """Hoisted out of the kernel: layer-0 weights concatenated along lanes."""
    w0 = jnp.concatenate([w1[0], w2[0]], axis=1)                 # (F, 2F)
    b0 = jnp.concatenate([b1[0], b2[0]], axis=0)[None, :]        # (1, 2F)
    return w0, b0


def _block_diag(wa, wb):
    """(L, F, F) x2 -> (L, 2F, 2F) block-diagonal, built wrapper-side."""
    L, F, _ = wa.shape
    z = jnp.zeros((L, F, F), wa.dtype)
    top = jnp.concatenate([wa, z], axis=2)
    bot = jnp.concatenate([z, wb], axis=2)
    return jnp.concatenate([top, bot], axis=1)


# NOTE(VMEM): at F=128 the resident weights are ~2.5 MiB -- trivially within
# every generation's scoped default.  Hard rule for scaled-up variants:
#   * v7x (64 MiB physical): F >= 1024 with 20 resident layers exceeds VMEM;
#     switch the weights to a per-layer streamed grid
#     (pl.BlockSpec((1, 2F, 2F), lambda l: (l, 0, 0)), "arbitrary" layer axis,
#     activation carried in VMEM scratch).
#   * v5e (16 MiB scoped default): F >= 512 needs
#     pltpu.CompilerParams(vmem_limit_bytes=...) on these pallas_calls.
def _chain_call(kernel, n_weight_args, B, F, L, args):
    tb = _batch_tile(B)
    weight_shapes = {
        'w0': (F, 2 * F), 'b0': (1, 2 * F),
        'wd': (L - 1, 2 * F, 2 * F), 'bd': (L - 1, 2 * F),
        'w1': (L - 1, F, F), 'b1': (L - 1, F),
        'w2': (L - 1, F, F), 'b2': (L - 1, F),
    }
    in_specs = [pl.BlockSpec((tb, F), lambda i: (i, 0))]         # x: batch-tiled
    for a in args[1:]:
        nd = a.ndim
        if nd == 3:
            in_specs.append(pl.BlockSpec(a.shape, lambda i: (0, 0, 0)))
        else:
            in_specs.append(pl.BlockSpec(a.shape, lambda i: (0, 0)))
    del n_weight_args, weight_shapes
    return pl.pallas_call(
        kernel,
        out_shape=jax.ShapeDtypeStruct((B, F), args[0].dtype),
        grid_spec=pltpu.PrefetchScalarGridSpec(
            num_scalar_prefetch=0,
            grid=(B // tb,),
            in_specs=in_specs,
            out_specs=pl.BlockSpec((tb, F), lambda i: (i, 0)),
        ),
        compiler_params=pltpu.CompilerParams(
            dimension_semantics=("parallel",)),
    )(*args)


@jax.jit
def _net_forward_chain_fused(x, w1, b1, w2, b2):
    B, F = x.shape
    w0, b0 = _layer0_cat(w1, b1, w2, b2)
    wd = _block_diag(w1[1:], w2[1:])                             # (L-1, 2F, 2F)
    bd = jnp.concatenate([b1[1:], b2[1:]], axis=1)               # (L-1, 2F)
    return _chain_call(_chain_kernel_fused, 4, B, F, NUM_LAYERS,
                       (x, w0, b0, wd, bd))


@jax.jit
def _net_forward_chain_split(x, w1, b1, w2, b2):
    B, F = x.shape
    w0, b0 = _layer0_cat(w1, b1, w2, b2)
    return _chain_call(_chain_kernel_split, 6, B, F, NUM_LAYERS,
                       (x, w0, b0, w1[1:], b1[1:], w2[1:], b2[1:]))


def net_forward_chain(x, w1, b1, w2, b2):
    """Full in-kernel chain (for when weights are NOT reused across calls)."""
    xp, B = _pad_batch(x)
    if _IS_V5E:
        out = _net_forward_chain_split(xp, w1, b1, w2, b2)
    else:
        out = _net_forward_chain_fused(xp, w1, b1, w2, b2)
    return out[:B]


# ---------------------------------------------------------------------------
# Parameter init (PyTorch nn.Linear default) and pure-JAX reference.
# ---------------------------------------------------------------------------
def init_block_params(key, features, num_layers):
    """U(-1/sqrt(fan_in), 1/sqrt(fan_in)); weights stored pre-transposed."""
    bound = 1.0 / np.sqrt(features)
    kw, kb = jax.random.split(key)
    w = jax.random.uniform(
        kw, (num_layers, features, features), jnp.float32, -bound, bound)
    b = jax.random.uniform(
        kb, (num_layers, features), jnp.float32, -bound, bound)
    return w, b


def reference(x, w1, b1, w2, b2):
    h1 = x
    h2 = x
    for i in range(NUM_LAYERS):
        h1 = h1 @ w1[i] + b1[i]
        h2 = h2 @ w2[i] + b2[i]
    return h1 + h2


if __name__ == "__main__":
    batch, features = 256, FEATURES   # 256 rows -> 2 grid steps of 128 (megacore)
    key = jax.random.PRNGKey(0)
    kx, k1, k2 = jax.random.split(key, 3)

    x = jax.random.normal(kx, (batch, features), jnp.float32)
    w1, b1 = init_block_params(k1, features, NUM_LAYERS)
    w2, b2 = init_block_params(k2, features, NUM_LAYERS)

    # One-time offline collapse of the purely-affine network (host, float64).
    w_eff, b_eff = collapse_params(w1, b1, w2, b2)

    out_fast = jax.block_until_ready(net_forward(x, w_eff, b_eff))
    out_chain = jax.block_until_ready(net_forward_chain(x, w1, b1, w2, b2))

    ref = reference(x, w1, b1, w2, b2)
    # Module-structured kernel: same math, possibly different MXU accumulation
    # grouping (block-diag fusion) -> still tight f32 tolerance.
    np.testing.assert_allclose(np.asarray(out_chain), np.asarray(ref),
                               rtol=1e-4, atol=1e-4)
    # Collapsed kernel: different (float64-collapsed) accumulation order.
    np.testing.assert_allclose(np.asarray(out_fast), np.asarray(ref),
                               rtol=1e-3, atol=1e-3)

    print("KERNEL_OK")
</pallas_src>

<mosaic_0001>
module attributes {stable_mosaic.version = 11 : i64} {
  func.func @_fused_affine_kernel(%arg0: i32, %arg1: memref<128x128xf32, #tpu.memory_space<vmem>>, %arg2: memref<128x128xf32, #tpu.memory_space<vmem>>, %arg3: memref<1x128xf32, #tpu.memory_space<vmem>>, %arg4: memref<128x128xf32, #tpu.memory_space<vmem>>) attributes {dimension_semantics = [#tpu.dimension_semantics<parallel>], iteration_bounds = array<i64: 2>, scalar_prefetch = 0 : i64, scratch_operands = 0 : i64, tpu.core_type = #tpu.core_type<tc>, window_params = [{transform_indices = @transform_0, window_bounds = array<i64: 128, 128>}, {pipeline_mode = #tpu.pipeline_mode<synchronous>, transform_indices = @transform_1, window_bounds = array<i64: 128, 128>}, {pipeline_mode = #tpu.pipeline_mode<synchronous>, transform_indices = @transform_2, window_bounds = array<i64: 1, 128>}, {transform_indices = @transform_3, window_bounds = array<i64: 128, 128>}]} {
    %c0 = arith.constant 0 : index
    %c0_0 = arith.constant 0 : index
    %0 = vector.load %arg1[%c0, %c0_0] : memref<128x128xf32, #tpu.memory_space<vmem>>, vector<128x128xf32>
    %c0_1 = arith.constant 0 : index
    %c0_2 = arith.constant 0 : index
    %1 = vector.load %arg2[%c0_1, %c0_2] : memref<128x128xf32, #tpu.memory_space<vmem>>, vector<128x128xf32>
    %cst = arith.constant dense<0.000000e+00> : vector<128x128xf32>
    %2 = tpu.matmul %0, %1, %cst {dimension_numbers = #tpu.dot_dimension_numbers<[1], [0], [0], [1], [0, 0, 1, 1], [], []>} : vector<128x128xf32>, vector<128x128xf32>, vector<128x128xf32> -> vector<128x128xf32>
    %c0_3 = arith.constant 0 : index
    %c0_4 = arith.constant 0 : index
    %3 = vector.load %arg3[%c0_3, %c0_4] : memref<1x128xf32, #tpu.memory_space<vmem>>, vector<1x128xf32>
    %4 = vector.broadcast %3 : vector<1x128xf32> to vector<128x128xf32>
    %5 = arith.addf %2, %4 : vector<128x128xf32>
    %c0_5 = arith.constant 0 : index
    %c0_6 = arith.constant 0 : index
    %6 = vector.load %arg4[%c0_5, %c0_6] : memref<128x128xf32, #tpu.memory_space<vmem>>, vector<128x128xf32>
    tpu.vector_store %arg4[%c0_5, %c0_6], %5 {strides = array<i32>} : memref<128x128xf32, #tpu.memory_space<vmem>>, vector<128x128xf32>,
    return
  }
  func.func @transform_0(%arg0: i32) -> (i32, i32) {
    %c0_i32 = arith.constant 0 : i32
    %c0_i32_0 = arith.constant 0 : i32
    return %arg0, %c0_i32 : i32, i32
  }
  func.func @transform_1(%arg0: i32) -> (i32, i32) {
    %c0_i32 = arith.constant 0 : i32
    %c0_i32_0 = arith.constant 0 : i32
    %c0_i32_1 = arith.constant 0 : i32
    return %c0_i32, %c0_i32_0 : i32, i32
  }
  func.func @transform_2(%arg0: i32) -> (i32, i32) {
    %c0_i32 = arith.constant 0 : i32
    %c0_i32_0 = arith.constant 0 : i32
    %c0_i32_1 = arith.constant 0 : i32
    return %c0_i32, %c0_i32_0 : i32, i32
  }
  func.func @transform_3(%arg0: i32) -> (i32, i32) {
    %c0_i32 = arith.constant 0 : i32
    %c0_i32_0 = arith.constant 0 : i32
    return %arg0, %c0_i32 : i32, i32
  }
}

</mosaic_0001>

<llo_original>
// kernel: _net_forward_padded.1
$region0: #{_net_forward_padded.1}
  #allocation0 [shape = 'u32[]', space=smem, size = 0x4, offset = 0x4, fixed_abs, tag = 'smem constant byte address 0x4 - core index']
  #allocation1 [shape = 'u32[144,128]{1,0:T(1,128)}', space=vmem, size = 0x12000, scoped, tag = 'internal scratch']
  %s0 = inlined_call_operand.hbm [shape: f32[256,128], index: 0, kind: input, shape index: {}]
  %s1 = inlined_call_operand.hbm [shape: f32[128,128], index: 1, kind: input, shape index: {}]
  %s2 = inlined_call_operand.vmem [shape: f32[1,128], index: 2, kind: input, shape index: {}]
  %s3 = inlined_call_operand.hbm [shape: f32[256,128], index: 3, kind: output, shape index: {}]
  %s4 = sld [smem:[#allocation0]]
  $region53: #{_net_forward_padded.1} parent=0
    _
  %s6 = ssub.s32 1, %s4
  %s7 = scalar_select 0, %s6, %s4
  $region1: #{_net_forward_padded.1} parent=0
    #allocation2 [shape = 'u8[131072]{0}', space=vmem, size = 0x20000, scoped, tag = 'input window, operand 0']
    #allocation3 [shape = 's32[2]{0}', space=sflag, size = 0x8, scoped, tag = 'scoped memory for _net_forward_padded.1']
    #allocation4 [shape = 's32[2]{0}', space=sflag, size = 0x8, scoped, tag = 'scoped memory for _net_forward_padded.1']
    #allocation5 [shape = 'u8[65536]{0}', space=vmem, size = 0x10000, scoped, tag = 'input window, operand 1, single buffered']
    #allocation6 [shape = 's32[1]{0}', space=sflag, size = 0x4, scoped, tag = 'scoped memory for _net_forward_padded.1']
    #allocation7 [shape = 'u8[131072]{0}', space=vmem, size = 0x20000, scoped, tag = 'output window, operand 0']
    %8 = vsyncpa [#allocation3], 0
    %s9 = scalar_lea.sflag [#allocation3], 1
    %10 = vsyncpa %s9, 0
    %11 = vsyncpa [#allocation6], 0
    %12 = vsyncpa [#allocation4], 0
    %s13 = scalar_lea.sflag [#allocation4], 1
    %14 = vsyncpa %s13, 0
    loop: start=0, step=1, limit=4
    $region2: #{_net_forward_padded.1} parent=1 // loop_pre_header
      _
    $region3: #{_net_forward_padded.1} parent=1 // loop_header
      %s16 = sphi 0, %s20
      %p17 = scmp.ge.s32.totalorder %s16, 4
      %s26 = sphi 0, %s28
      %s29 = sphi 0, %s26
      %s30 = sphi 0, %s29
      %s46 = sphi 0, %s30
      %s50 = sphi 0, %s50
      %s52 = sphi 0, %s50
      %s53 = sphi 0, %s52
      %s67 = sphi 0, %s53
      %s71 = sphi 0, %s71
      %s73 = sphi 0, %s71
      %s74 = sphi 0, %s73
      %s88 = sphi 0, %s74
      %s94 = sphi 0, %s96
      %s97 = sphi 0, %s94
      %s98 = sphi 0, %s97
      %s114 = sphi 0, %s98
    $region4: #{_net_forward_padded.1} parent=1 // loop_header_branch
      %19 = sbr.rel (%p17) target = $region8
    $region5: #{_net_forward_padded.1} parent=1 // loop_body
      %s21 = ssub.s32 %s16, 1
      %s22 = ssub.s32 %s16, 2
      %s23 = sadd.s32 %s16, 1
      %s24 = ssub.s32 %s16, %s23
      %p25 = scmp.eq.s32.totalorder %s24, 0
      %s27 = sadd.s32 %s26, 1
      %s28 = scalar_select %p25, %s26, %s27
      %p31 = pneg %p25
      %p32 = scmp.eq.s32.totalorder %s16, 1
      %p33 = por %p31, %p32
      %p34 = scmp.ne.s32.totalorder %s26, %s29
      %p35 = scmp.eq.s32.totalorder %s16, 0
      %p36 = por %p34, %p35
      %p37 = scmp.ne.s32.totalorder %s26, %s29
      %p38 = scmp.eq.s32.totalorder %s21, 1
      %p39 = por %p37, %p38
      %p40 = scmp.ne.s32.totalorder %s29, %s30
      %p41 = scmp.eq.s32.totalorder %s21, 0
      %p42 = por %p40, %p41
      %p43 = scmp.ne.s32.totalorder %s29, %s30
      %p44 = scmp.eq.s32.totalorder %s22, 1
      %p45 = por %p43, %p44
      %p47 = scmp.ne.s32.totalorder %s30, %s46
      %p48 = scmp.eq.s32.totalorder %s22, 0
      %p49 = por %p47, %p48
      %s51 = sadd.s32 %s50, 1
      %p54 = scmp.eq.s32.totalorder %s16, 1
      %p55 = scmp.ne.s32.totalorder %s50, %s52
      %p56 = scmp.eq.s32.totalorder %s16, 0
      %p57 = por %p55, %p56
      %p58 = scmp.ne.s32.totalorder %s50, %s52
      %p59 = scmp.eq.s32.totalorder %s21, 1
      %p60 = por %p58, %p59
      %p61 = scmp.ne.s32.totalorder %s52, %s53
      %p62 = scmp.eq.s32.totalorder %s21, 0
      %p63 = por %p61, %p62
      %p64 = scmp.ne.s32.totalorder %s52, %s53
      %p65 = scmp.eq.s32.totalorder %s22, 1
      %p66 = por %p64, %p65
      %p68 = scmp.ne.s32.totalorder %s53, %s67
      %p69 = scmp.eq.s32.totalorder %s22, 0
      %p70 = por %p68, %p69
      %s72 = sadd.s32 %s71, 1
      %p75 = scmp.eq.s32.totalorder %s16, 1
      %p76 = scmp.ne.s32.totalorder %s71, %s73
      %p77 = scmp.eq.s32.totalorder %s16, 0
      %p78 = por %p76, %p77
      %p79 = scmp.ne.s32.totalorder %s71, %s73
      %p80 = scmp.eq.s32.totalorder %s21, 1
      %p81 = por %p79, %p80
      %p82 = scmp.ne.s32.totalorder %s73, %s74
      %p83 = scmp.eq.s32.totalorder %s21, 0
      %p84 = por %p82, %p83
      %p85 = scmp.ne.s32.totalorder %s73, %s74
      %p86 = scmp.eq.s32.totalorder %s22, 1
      %p87 = por %p85, %p86
      %p89 = scmp.ne.s32.totalorder %s74, %s88
      %p90 = scmp.eq.s32.totalorder %s22, 0
      %p91 = por %p89, %p90
      %s92 = ssub.s32 %s16, %s23
      %p93 = scmp.eq.s32.totalorder %s92, 0
      %s95 = sadd.s32 %s94, 1
      %s96 = scalar_select %p93, %s94, %s95
      %p99 = pneg %p93
      %p100 = scmp.eq.s32.totalorder %s16, 1
      %p101 = por %p99, %p100
      %p102 = scmp.ne.s32.totalorder %s94, %s97
      %p103 = scmp.eq.s32.totalorder %s16, 0
      %p104 = por %p102, %p103
      %p105 = scmp.ne.s32.totalorder %s94, %s97
      %p106 = scmp.eq.s32.totalorder %s21, 1
      %p107 = por %p105, %p106
      %p108 = scmp.ne.s32.totalorder %s97, %s98
      %p109 = scmp.eq.s32.totalorder %s21, 0
      %p110 = por %p108, %p109
      %p111 = scmp.ne.s32.totalorder %s97, %s98
      %p112 = scmp.eq.s32.totalorder %s22, 1
      %p113 = por %p111, %p112
      %p115 = scmp.ne.s32.totalorder %s98, %s114
      %p116 = scmp.eq.s32.totalorder %s22, 0
      %p117 = por %p115, %p116
      %p118 = scmp.le.s32.totalorder 1, %s16
      %p119 = scmp.lt.s32.totalorder %s16, 3
      %p120 = pnand %p118, %p119
      %p121 = pneg %p120
      // Predicated region
      $region9: #{_net_forward_padded.1} parent=5 // pred_check
        _
      $region10: #{_net_forward_padded.1} parent=5 // pred_check_branch
        %123 = sbr.rel (%p120) target = $region12
      $region11: #{_net_forward_padded.1} parent=5 // pred_region
        %s124 = ssub.s32 %s16, 1
        // Predicated region
        $region13: #{_net_forward_padded.1} parent=11 // pred_check
          %p125 = pneg %p63
        $region14: #{_net_forward_padded.1} parent=11 // pred_check_branch
          %127 = sbr.rel (%p125) target = $region16
        $region15: #{_net_forward_padded.1} parent=11 // pred_region
          %s129 = ssub.s32 2048, 2048
          %130 = vsyncadd [#allocation6], %s129
          %s131 = sshll.u32 [#allocation5], 4
          %s132 = int_to_ptr.vmem [resolvable:$true] %s131
          %137 = dma.hbm_to_vmem [thread:$0]  %s1, 2048, %s132, [#allocation6], 128, 128, 8
        $region16: #{_net_forward_padded.1} parent=11 // pred_fallthru
          _
        // Predicated region
        $region17: #{_net_forward_padded.1} parent=11 // pred_check
          %p138 = pneg %p84
        $region18: #{_net_forward_padded.1} parent=11 // pred_check_branch
          %140 = sbr.rel (%p138) target = $region20
        $region19: #{_net_forward_padded.1} parent=11 // pred_region
          _
        $region20: #{_net_forward_padded.1} parent=11 // pred_fallthru
          _
      $region12: #{_net_forward_padded.1} parent=5 // pred_fallthru
        _
      %p141 = scmp.lt.s32.totalorder %s16, 2
      // Predicated region
      $region21: #{_net_forward_padded.1} parent=5 // pred_check
        %p142 = pneg %p141
      $region22: #{_net_forward_padded.1} parent=5 // pred_check_branch
        %144 = sbr.rel (%p142) target = $region24
      $region23: #{_net_forward_padded.1} parent=5 // pred_region
        // Predicated region
        $region25: #{_net_forward_padded.1} parent=23 // pred_check
          %p145 = pneg %p36
        $region26: #{_net_forward_padded.1} parent=23 // pred_check_branch
          %147 = sbr.rel (%p145) target = $region28
        $region27: #{_net_forward_padded.1} parent=23 // pred_region
          %s148 = sand.u32 %s26, 1
          %s149 = scalar_lea.sflag [#allocation3], %s148
          %s150 = sand.u32 %s26, 1
          %s151 = smul.addr %s150, 128
          %s152 = scalar_lea.vmem [#allocation2], %s151
          %s153 = smul.u32 16, %s16
          %s155 = ssub.s32 2048, 2048
          %156 = vsyncadd %s149, %s155
          %s157 = smul.addr %s153, 128
          %s158 = scalar_lea.hbm %s0, %s157
          %s159 = sshll.u32 %s152, 4
          %s160 = int_to_ptr.vmem [resolvable:$true] %s159
          %165 = dma.hbm_to_vmem [thread:$0]  %s158, 2048, %s160, %s149, 128, 128, 8
        $region28: #{_net_forward_padded.1} parent=23 // pred_fallthru
          _
      $region24: #{_net_forward_padded.1} parent=5 // pred_fallthru
        _
      %p166 = scmp.le.s32.totalorder 1, %s16
      %p167 = scmp.lt.s32.totalorder %s16, 3
      %p168 = pnand %p166, %p167
      %p169 = pneg %p168
      // Predicated region
      $region29: #{_net_forward_padded.1} parent=5 // pred_check
        _
      $region30: #{_net_forward_padded.1} parent=5 // pred_check_branch
        %171 = sbr.rel (%p168) target = $region32
      $region31: #{_net_forward_padded.1} parent=5 // pred_region
        %s172 = ssub.s32 %s16, 1
        %s173 = sand.u32 %s29, 1
        %s174 = scalar_lea.sflag [#allocation3], %s173
        %s175 = sand.u32 %s29, 1
        %s176 = smul.addr %s175, 128
        %s177 = scalar_lea.vmem [#allocation2], %s176
        // Predicated region
        $region33: #{_net_forward_padded.1} parent=31 // pred_check
          %p178 = pneg %p42
        $region34: #{_net_forward_padded.1} parent=31 // pred_check_branch
          %180 = sbr.rel (%p178) target = $region36
        $region35: #{_net_forward_padded.1} parent=31 // pred_region
          %181 = dma.done %s174, 2048
        $region36: #{_net_forward_padded.1} parent=31 // pred_fallthru
          _
        // Predicated region
        $region37: #{_net_forward_padded.1} parent=31 // pred_check
          %p182 = pneg %p63
        $region38: #{_net_forward_padded.1} parent=31 // pred_check_branch
          %184 = sbr.rel (%p182) target = $region40
        $region39: #{_net_forward_padded.1} parent=31 // pred_region
          %185 = dma.done [#allocation6], 2048
        $region40: #{_net_forward_padded.1} parent=31 // pred_fallthru
          _
        %s186 = sand.u32 %s29, 1
        %s187 = scalar_lea.sflag [#allocation3], %s186
        %s188 = sand.u32 %s29, 1
        %s189 = smul.addr %s188, 128
        %s190 = scalar_lea.vmem [#allocation2], %s189
        %p191 = pneg %p42
        %p192 = pneg %p39
        %p193 = pneg %p63
        %p194 = pneg %p60
        %p195 = pneg %p84
        %p196 = pneg %p81
        %p197 = pneg %p110
        %p198 = pneg %p107
        %s199 = sand.u32 %s97, 1
        %s200 = scalar_lea.sflag [#allocation4], %s199
        %s201 = sand.u32 %s97, 1
        %s202 = smul.addr %s201, 128
        %s203 = scalar_lea.vmem [#allocation7], %s202
        %s204 = smul.u32 16, %s21
        %s205 = smul.u32 16, %s21
        %v206 = vld [vmem:[%s177] sm:$0xff]
        %v207 = vld [vmem:[%s177 + $0x8] sm:$0xff]
        %v208 = vld [vmem:[%s177 + $0x10] sm:$0xff]
        %v209 = vld [vmem:[%s177 + $0x18] sm:$0xff]
        %v210 = vld [vmem:[%s177 + $0x20] sm:$0xff]
        %v211 = vld [vmem:[%s177 + $0x28] sm:$0xff]
        %v212 = vld [vmem:[%s177 + $0x30] sm:$0xff]
        %v213 = vld [vmem:[%s177 + $0x38] sm:$0xff]
        %v214 = vld [vmem:[%s177 + $0x40] sm:$0xff]
        %v215 = vld [vmem:[%s177 + $0x48] sm:$0xff]
        %v216 = vld [vmem:[%s177 + $0x50] sm:$0xff]
        %v217 = vld [vmem:[%s177 + $0x58] sm:$0xff]
        %v218 = vld [vmem:[%s177 + $0x60] sm:$0xff]
        %v219 = vld [vmem:[%s177 + $0x68] sm:$0xff]
        %v220 = vld [vmem:[%s177 + $0x70] sm:$0xff]
        %v221 = vld [vmem:[%s177 + $0x78] sm:$0xff]
        %v222 = vld [vmem:[#allocation5] sm:$0xff]
        %v223 = vld [vmem:[#allocation5 + $0x8] sm:$0xff]
        %v224 = vld [vmem:[#allocation5 + $0x10] sm:$0xff]
        %v225 = vld [vmem:[#allocation5 + $0x18] sm:$0xff]
        %v226 = vld [vmem:[#allocation5 + $0x20] sm:$0xff]
        %v227 = vld [vmem:[#allocation5 + $0x28] sm:$0xff]
        %v228 = vld [vmem:[#allocation5 + $0x30] sm:$0xff]
        %v229 = vld [vmem:[#allocation5 + $0x38] sm:$0xff]
        %v230 = vld [vmem:[#allocation5 + $0x40] sm:$0xff]
        %v231 = vld [vmem:[#allocation5 + $0x48] sm:$0xff]
        %v232 = vld [vmem:[#allocation5 + $0x50] sm:$0xff]
        %v233 = vld [vmem:[#allocation5 + $0x58] sm:$0xff]
        %v234 = vld [vmem:[#allocation5 + $0x60] sm:$0xff]
        %v235 = vld [vmem:[#allocation5 + $0x68] sm:$0xff]
        %v236 = vld [vmem:[#allocation5 + $0x70] sm:$0xff]
        %v237 = vld [vmem:[#allocation5 + $0x78] sm:$0xff]
        %v238 = vld [vmem:[%s2] sm:$0x1]
        %v240 = vlaneseq
        %v241 = vshrl.u32 %v240, 7
        %v242 = vsub.s32 0, %v241
        %v243 = vrot.slane %v238, %v242
        %245 = vmatprep.subr.mxu0 0.0
        %246 = vmatpush1.msra.mxu0 %v237
        %247 = vmatprep.subr.mxu0 0.0
        %248 = vmatpush1.msra.mxu0 %v236
        %249 = vmatprep.subr.mxu0 0.0
        %250 = vmatpush1.msra.mxu0 %v235
        %251 = vmatprep.subr.mxu0 0.0
        %252 = vmatpush1.msra.mxu0 %v234
        %253 = vmatprep.subr.mxu0 0.0
        %254 = vmatpush1.msra.mxu0 %v233
        %255 = vmatprep.subr.mxu0 0.0
        %256 = vmatpush1.msra.mxu0 %v232
        %257 = vmatprep.subr.mxu0 0.0
        %258 = vmatpush1.msra.mxu0 %v231
        %259 = vmatprep.subr.mxu0 0.0
        %260 = vmatpush1.msra.mxu0 %v230
        %261 = vmatprep.subr.mxu0 0.0
        %262 = vmatpush1.msra.mxu0 %v229
        %263 = vmatprep.subr.mxu0 0.0
        %264 = vmatpush1.msra.mxu0 %v228
        %265 = vmatprep.subr.mxu0 0.0
        %266 = vmatpush1.msra.mxu0 %v227
        %267 = vmatprep.subr.mxu0 0.0
        %268 = vmatpush1.msra.mxu0 %v226
        %269 = vmatprep.subr.mxu0 0.0
        %270 = vmatpush1.msra.mxu0 %v225
        %271 = vmatprep.subr.mxu0 0.0
        %272 = vmatpush1.msra.mxu0 %v224
        %273 = vmatprep.subr.mxu0 0.0
        %274 = vmatpush1.msra.mxu0 %v223
        %275 = vmatprep.subr.mxu0 0.0
        %276 = vmatpush1.msra.mxu0 %v222
        %277 = vmatprep.subr.mxu0 0.0
        %278 = vmatpush2.msra.mxu0 0.0
        %279 = vmatprep.subr.mxu0 0.0
        %280 = vmatpush2.msra.mxu0 0.0
        %281 = vmatprep.subr.mxu0 0.0
        %282 = vmatpush2.msra.mxu0 0.0
        %283 = vmatprep.subr.mxu0 0.0
        %284 = vmatpush2.msra.mxu0 0.0
        %285 = vmatprep.subr.mxu0 0.0
        %286 = vmatpush2.msra.mxu0 0.0
        %287 = vmatprep.subr.mxu0 0.0
        %288 = vmatpush2.msra.mxu0 0.0
        %289 = vmatprep.subr.mxu0 0.0
        %290 = vmatpush2.msra.mxu0 0.0
        %291 = vmatprep.subr.mxu0 0.0
        %292 = vmatpush2.msra.mxu0 0.0
        %293 = vmatprep.subr.mxu0 0.0
        %294 = vmatpush2.msra.mxu0 0.0
        %295 = vmatprep.subr.mxu0 0.0
        %296 = vmatpush2.msra.mxu0 0.0
        %297 = vmatprep.subr.mxu0 0.0
        %298 = vmatpush2.msra.mxu0 0.0
        %299 = vmatprep.subr.mxu0 0.0
        %300 = vmatpush2.msra.mxu0 0.0
        %301 = vmatprep.subr.mxu0 0.0
        %302 = vmatpush2.msra.mxu0 0.0
        %303 = vmatprep.subr.mxu0 0.0
        %304 = vmatpush2.msra.mxu0 0.0
        %305 = vmatprep.subr.mxu0 0.0
        %306 = vmatpush2.msra.mxu0 0.0
        %307 = vmatprep.subr.mxu0 0.0
        %308 = vmatpush2.msra.mxu0 0.0
        %309 = vmatprep.mubr.f32.mxu0 0.0
        %310 = vmatmul.mubr.f32.gmra.mxu0 %v206
        %v311 = vpop.f32.mrf.mxu0
        %v312 = vadd.f32 %v243, %v311
        %v313 = vpop.f32.mrf.mxu0
        %314 = vmatprep.mubr.f32.mxu0 0.0
        %315 = vmatmul.mubr.f32.gmra.mxu0 %v207
        %v316 = vpop.f32.mrf.mxu0
        %v317 = vadd.f32 %v243, %v316
        %v318 = vpop.f32.mrf.mxu0
        %319 = vmatprep.mubr.f32.mxu0 0.0
        %320 = vmatmul.mubr.f32.gmra.mxu0 %v208
        %v321 = vpop.f32.mrf.mxu0
        %v322 = vadd.f32 %v243, %v321
        %v323 = vpop.f32.mrf.mxu0
        %324 = vmatprep.mubr.f32.mxu0 0.0
        %325 = vmatmul.mubr.f32.gmra.mxu0 %v209
        %v326 = vpop.f32.mrf.mxu0
        %v327 = vadd.f32 %v243, %v326
        %v328 = vpop.f32.mrf.mxu0
        %329 = vmatprep.mubr.f32.mxu0 0.0
        %330 = vmatmul.mubr.f32.gmra.mxu0 %v210
        %v331 = vpop.f32.mrf.mxu0
        %v332 = vadd.f32 %v243, %v331
        %v333 = vpop.f32.mrf.mxu0
        %334 = vmatprep.mubr.f32.mxu0 0.0
        %335 = vmatmul.mubr.f32.gmra.mxu0 %v211
        %v336 = vpop.f32.mrf.mxu0
        %v337 = vadd.f32 %v243, %v336
        %v338 = vpop.f32.mrf.mxu0
        %339 = vmatprep.mubr.f32.mxu0 0.0
        %340 = vmatmul.mubr.f32.gmra.mxu0 %v212
        %v341 = vpop.f32.mrf.mxu0
        %v342 = vadd.f32 %v243, %v341
        %v343 = vpop.f32.mrf.mxu0
        %344 = vmatprep.mubr.f32.mxu0 0.0
        %345 = vmatmul.mubr.f32.gmra.mxu0 %v213
        %v346 = vpop.f32.mrf.mxu0
        %v347 = vadd.f32 %v243, %v346
        %v348 = vpop.f32.mrf.mxu0
        %349 = vmatprep.mubr.f32.mxu0 0.0
        %350 = vmatmul.mubr.f32.gmra.mxu0 %v214
        %v351 = vpop.f32.mrf.mxu0
        %v352 = vadd.f32 %v243, %v351
        %v353 = vpop.f32.mrf.mxu0
        %354 = vmatprep.mubr.f32.mxu0 0.0
        %355 = vmatmul.mubr.f32.gmra.mxu0 %v215
        %v356 = vpop.f32.mrf.mxu0
        %v357 = vadd.f32 %v243, %v356
        %v358 = vpop.f32.mrf.mxu0
        %359 = vmatprep.mubr.f32.mxu0 0.0
        %360 = vmatmul.mubr.f32.gmra.mxu0 %v216
        %v361 = vpop.f32.mrf.mxu0
        %v362 = vadd.f32 %v243, %v361
        %v363 = vpop.f32.mrf.mxu0
        %364 = vmatprep.mubr.f32.mxu0 0.0
        %365 = vmatmul.mubr.f32.gmra.mxu0 %v217
        %v366 = vpop.f32.mrf.mxu0
        %v367 = vadd.f32 %v243, %v366
        %v368 = vpop.f32.mrf.mxu0
        %369 = vmatprep.mubr.f32.mxu0 0.0
        %370 = vmatmul.mubr.f32.gmra.mxu0 %v218
        %v371 = vpop.f32.mrf.mxu0
        %v372 = vadd.f32 %v243, %v371
        %v373 = vpop.f32.mrf.mxu0
        %374 = vmatprep.mubr.f32.mxu0 0.0
        %375 = vmatmul.mubr.f32.gmra.mxu0 %v219
        %v376 = vpop.f32.mrf.mxu0
        %v377 = vadd.f32 %v243, %v376
        %v378 = vpop.f32.mrf.mxu0
        %379 = vmatprep.mubr.f32.mxu0 0.0
        %380 = vmatmul.mubr.f32.gmra.mxu0 %v220
        %v381 = vpop.f32.mrf.mxu0
        %v382 = vadd.f32 %v243, %v381
        %v383 = vpop.f32.mrf.mxu0
        %384 = vmatprep.mubr.f32.mxu0 0.0
        %385 = vmatmul.mubr.f32.gmra.mxu0 %v221
        %v386 = vpop.f32.mrf.mxu0
        %v387 = vadd.f32 %v243, %v386
        %v388 = vpop.f32.mrf.mxu0
        %389 = vdwg.mxu0
        %390 = vst [vmem:[%s203] sm:$0xff] %v312
        %391 = vst [vmem:[%s203 + $0x8] sm:$0xff] %v317
        %392 = vst [vmem:[%s203 + $0x10] sm:$0xff] %v322
        %393 = vst [vmem:[%s203 + $0x18] sm:$0xff] %v327
        %394 = vst [vmem:[%s203 + $0x20] sm:$0xff] %v332
        %395 = vst [vmem:[%s203 + $0x28] sm:$0xff] %v337
        %396 = vst [vmem:[%s203 + $0x30] sm:$0xff] %v342
        %397 = vst [vmem:[%s203 + $0x38] sm:$0xff] %v347
        %398 = vst [vmem:[%s203 + $0x40] sm:$0xff] %v352
        %399 = vst [vmem:[%s203 + $0x48] sm:$0xff] %v357
        %400 = vst [vmem:[%s203 + $0x50] sm:$0xff] %v362
        %401 = vst [vmem:[%s203 + $0x58] sm:$0xff] %v367
        %402 = vst [vmem:[%s203 + $0x60] sm:$0xff] %v372
        %403 = vst [vmem:[%s203 + $0x68] sm:$0xff] %v377
        %404 = vst [vmem:[%s203 + $0x70] sm:$0xff] %v382
        %405 = vst [vmem:[%s203 + $0x78] sm:$0xff] %v387
        %s406 = sand.u32 %s97, 1
        %s407 = scalar_lea.sflag [#allocation4], %s406
        %s408 = sand.u32 %s97, 1
        %s409 = smul.addr %s408, 128
        %s410 = scalar_lea.vmem [#allocation7], %s409
        // Predicated region
        $region41: #{_net_forward_padded.1} parent=31 // pred_check
          %p411 = pneg %p107
        $region42: #{_net_forward_padded.1} parent=31 // pred_check_branch
          %413 = sbr.rel (%p411) target = $region44
        $region43: #{_net_forward_padded.1} parent=31 // pred_region
          %s414 = smul.u32 16, %s21
          %s416 = ssub.s32 2048, 2048
          %417 = vsyncadd %s407, %s416
          %s418 = smul.addr %s414, 128
          %s419 = scalar_lea.hbm %s3, %s418
          %s420 = sshll.u32 %s410, 4
          %s421 = int_to_ptr.vmem [resolvable:$true] %s420
          %426 = dma.vmem_to_hbm [thread:$0]  %s421, 2048, %s419, %s407, 128, 128, 8
        $region44: #{_net_forward_padded.1} parent=31 // pred_fallthru
          _
      $region32: #{_net_forward_padded.1} parent=5 // pred_fallthru
        _
      %p427 = scmp.le.s32.totalorder 2, %s16
      // Predicated region
      $region45: #{_net_forward_padded.1} parent=5 // pred_check
        %p428 = pneg %p427
      $region46: #{_net_forward_padded.1} parent=5 // pred_check_branch
        %430 = sbr.rel (%p428) target = $region48
      $region47: #{_net_forward_padded.1} parent=5 // pred_region
        %s431 = ssub.s32 %s16, 2
        // Predicated region
        $region49: #{_net_forward_padded.1} parent=47 // pred_check
          %p432 = pneg %p113
        $region50: #{_net_forward_padded.1} parent=47 // pred_check_branch
          %434 = sbr.rel (%p432) target = $region52
        $region51: #{_net_forward_padded.1} parent=47 // pred_region
          %s435 = sand.u32 %s98, 1
          %s436 = scalar_lea.sflag [#allocation4], %s435
          %s437 = sand.u32 %s98, 1
          %s438 = smul.addr %s437, 128
          %s439 = scalar_lea.vmem [#allocation7], %s438
          %440 = dma.done %s436, 2048
        $region52: #{_net_forward_padded.1} parent=47 // pred_fallthru
          _
      $region48: #{_net_forward_padded.1} parent=5 // pred_fallthru
        _
    $region6: #{_net_forward_padded.1} parent=1 // loop_footer
      %s20 = sadd.s32 1, %s16
    $region7: #{_net_forward_padded.1} parent=1 // loop_footer_branch
      %15 = sbr.rel target = $region3
    $region8: #{_net_forward_padded.1} parent=1 // loop_exit
      _
    %441 = vsyncpa [#allocation3], 1
    %s442 = scalar_lea.sflag [#allocation3], 1
    %443 = vsyncpa %s442, 1
    %444 = vsyncpa [#allocation6], 1
    %445 = vsyncpa [#allocation4], 1
    %s446 = scalar_lea.sflag [#allocation4], 1
    %447 = vsyncpa %s446, 1

</llo_original>
